<compile_context>
chip_gen: v7x
topology: tpu7x:2x2x1
jax: 0.10.0
libtpu: 0.0.40
codegen_flags: <defaults>
</compile_context>

<pallas_src>
import functools

import jax
import jax.numpy as jnp
from jax.experimental import pallas as pl
from jax.experimental.pallas import tpu as pltpu

H1 = 512     # linear1 out
H2 = 128     # linear2 out
SUBLANE = 8


def _round_up(x, m):
    return (x + m - 1) // m * m


def _mlp_kernel(x_ref, w1_ref, b1_ref, w2_ref, b2_ref, w3_ref, b3_ref, o_ref):
    # MXU input dtype follows the (pre-cast) weight dtype; accumulation is
    # always f32 via preferred_element_type. Bias add / ReLU stay f32.
    cdt = w1_ref.dtype

    x = x_ref[...].astype(cdt)
    h1 = jnp.dot(x, w1_ref[...], preferred_element_type=jnp.float32) + b1_ref[...]
    h1 = jnp.maximum(h1, 0.0)

    h2 = jnp.dot(h1.astype(cdt), w2_ref[...],
                 preferred_element_type=jnp.float32) + b2_ref[...]
    h2 = jnp.maximum(h2, 0.0)

    h3 = jnp.dot(h2.astype(cdt), w3_ref[...],
                 preferred_element_type=jnp.float32) + b3_ref[...]
    o_ref[...] = jnp.maximum(h3, 0.0).astype(o_ref.dtype)


def prepare_params(w1, b1, w2, b2, w3, b3, compute_dtype=jnp.bfloat16):
    """One-time per-parameter-set prep: cast weights to the MXU input dtype
    (bf16 by default — native on v6e/v7x, still the faster MXU path on v5e).
    Biases stay f32 (they are added to the f32 accumulator)."""
    return (w1.astype(compute_dtype), b1,
            w2.astype(compute_dtype), b2,
            w3.astype(compute_dtype), b3)


@jax.jit
def simple_model_forward(x, w1, b1, w2, b2, w3, b3):
    batch, in_features = x.shape
    outputs = w3.shape[1]

    # Batch tile: cover small batches in one step (rounded to the sublane),
    # cap at 1024 rows. For mid/large batches make sure there are at least
    # two grid steps so v7x's two TensorCores both get work.
    tile_b = min(1024, _round_up(batch, SUBLANE))
    if batch > 256 and pl.cdiv(batch, tile_b) < 2:
        tile_b = _round_up(pl.cdiv(batch, 2), SUBLANE)

    grid = (pl.cdiv(batch, tile_b),)
    # NOTE: the last batch block may be ragged; rows are independent, so
    # garbage in out-of-bounds rows cannot contaminate valid rows and OOB
    # writes are dropped by the pipeline.

    w_bytes = (w1.size + w2.size + w3.size) * w1.dtype.itemsize
    b_bytes = (b1.size + b2.size + b3.size) * b1.dtype.itemsize
    flops = 2 * batch * (in_features * H1 + H1 * H2 + H2 * outputs)
    bytes_accessed = (x.size * x.dtype.itemsize + w_bytes + b_bytes
                      + batch * outputs * 4)

    return pl.pallas_call(
        _mlp_kernel,
        out_shape=jax.ShapeDtypeStruct((batch, outputs), jnp.float32),
        grid=grid,
        in_specs=[
            pl.BlockSpec((tile_b, in_features), lambda i: (i, 0)),  # x: batch-tiled
            pl.BlockSpec((in_features, H1),     lambda i: (0, 0)),  # w1: VMEM-resident
            pl.BlockSpec((1, H1),               lambda i: (0, 0)),  # b1
            pl.BlockSpec((H1, H2),              lambda i: (0, 0)),  # w2
            pl.BlockSpec((1, H2),               lambda i: (0, 0)),  # b2
            pl.BlockSpec((H2, outputs),         lambda i: (0, 0)),  # w3
            pl.BlockSpec((1, outputs),          lambda i: (0, 0)),  # b3
        ],
        out_specs=pl.BlockSpec((tile_b, outputs), lambda i: (i, 0)),
        compiler_params=pltpu.CompilerParams(
            dimension_semantics=("parallel",),
            vmem_limit_bytes=32 * 1024 * 1024),
        cost_estimate=pl.CostEstimate(
            flops=flops, transcendentals=0, bytes_accessed=bytes_accessed),
    )(x, w1, b1, w2, b2, w3, b3)


def init_params(key, in_features, outputs):
    """Deterministic init mimicking PyTorch nn.Linear default:
    U(-1/sqrt(fan_in), 1/sqrt(fan_in)) for both weight and bias."""
    def linear_init(k, fan_in, fan_out):
        kw, kb = jax.random.split(k)
        bound = 1.0 / jnp.sqrt(jnp.float32(fan_in))
        w = jax.random.uniform(kw, (fan_in, fan_out), jnp.float32, -bound, bound)
        b = jax.random.uniform(kb, (1, fan_out), jnp.float32, -bound, bound)
        return w, b

    k1, k2, k3 = jax.random.split(key, 3)
    w1, b1 = linear_init(k1, in_features, H1)
    w2, b2 = linear_init(k2, H1, H2)
    w3, b3 = linear_init(k3, H2, outputs)
    return w1, b1, w2, b2, w3, b3


def _reference_forward(x, w1, b1, w2, b2, w3, b3):
    h1 = jnp.maximum(x @ w1 + b1, 0.0)
    h2 = jnp.maximum(h1 @ w2 + b2, 0.0)
    return jnp.maximum(h2 @ w3 + b3, 0.0)


if __name__ == "__main__":
    in_features = 32
    outputs = 8
    batch = 8

    key = jax.random.PRNGKey(0)
    kx, kp = jax.random.split(key)
    x = jax.random.normal(kx, (batch, in_features), jnp.float32)
    params = init_params(kp, in_features, outputs)

    ref = _reference_forward(x, *params)

    # Default (bf16 MXU inputs, f32 accumulation): looser tolerance.
    out = simple_model_forward(x, *prepare_params(*params))
    jax.block_until_ready(out)
    assert out.shape == (batch, outputs)
    assert jnp.allclose(out, ref, atol=5e-2, rtol=5e-2), "bf16 path mismatch"

    # f32 path: strict tolerance vs the JAX reference.
    out_f32 = simple_model_forward(
        x, *prepare_params(*params, compute_dtype=jnp.float32))
    jax.block_until_ready(out_f32)
    assert jnp.allclose(out_f32, ref, atol=1e-5, rtol=1e-5), "f32 path mismatch"

    print("KERNEL_OK")
</pallas_src>

<mosaic_0001>
module attributes {stable_mosaic.version = 11 : i64} {
  func.func @_mlp_kernel(%arg0: i32, %arg1: memref<8x32xf32, #tpu.memory_space<vmem>>, %arg2: memref<32x512xbf16, #tpu.memory_space<vmem>>, %arg3: memref<1x512xf32, #tpu.memory_space<vmem>>, %arg4: memref<512x128xbf16, #tpu.memory_space<vmem>>, %arg5: memref<1x128xf32, #tpu.memory_space<vmem>>, %arg6: memref<128x8xbf16, #tpu.memory_space<vmem>>, %arg7: memref<1x8xf32, #tpu.memory_space<vmem>>, %arg8: memref<8x8xf32, #tpu.memory_space<vmem>>) attributes {dimension_semantics = [#tpu.dimension_semantics<parallel>], iteration_bounds = array<i64: 1>, scalar_prefetch = 0 : i64, scratch_operands = 0 : i64, tpu.core_type = #tpu.core_type<tc>, window_params = [{transform_indices = @transform_0, window_bounds = array<i64: 8, 32>}, {pipeline_mode = #tpu.pipeline_mode<synchronous>, transform_indices = @transform_1, window_bounds = array<i64: 32, 512>}, {pipeline_mode = #tpu.pipeline_mode<synchronous>, transform_indices = @transform_2, window_bounds = array<i64: 1, 512>}, {pipeline_mode = #tpu.pipeline_mode<synchronous>, transform_indices = @transform_3, window_bounds = array<i64: 512, 128>}, {pipeline_mode = #tpu.pipeline_mode<synchronous>, transform_indices = @transform_4, window_bounds = array<i64: 1, 128>}, {pipeline_mode = #tpu.pipeline_mode<synchronous>, transform_indices = @transform_5, window_bounds = array<i64: 128, 8>}, {pipeline_mode = #tpu.pipeline_mode<synchronous>, transform_indices = @transform_6, window_bounds = array<i64: 1, 8>}, {transform_indices = @transform_7, window_bounds = array<i64: 8, 8>}]} {
    %c0 = arith.constant 0 : index
    %c0_0 = arith.constant 0 : index
    %0 = vector.load %arg1[%c0, %c0_0] : memref<8x32xf32, #tpu.memory_space<vmem>>, vector<8x32xf32>
    %1 = arith.truncf %0 : vector<8x32xf32> to vector<8x32xbf16>
    %c0_1 = arith.constant 0 : index
    %c0_2 = arith.constant 0 : index
    %2 = vector.load %arg2[%c0_1, %c0_2] : memref<32x512xbf16, #tpu.memory_space<vmem>>, vector<32x512xbf16>
    %cst = arith.constant dense<0.000000e+00> : vector<8x512xf32>
    %3 = tpu.matmul %1, %2, %cst {dimension_numbers = #tpu.dot_dimension_numbers<[1], [0], [0], [1], [0, 0, 1, 1], [], []>} : vector<8x32xbf16>, vector<32x512xbf16>, vector<8x512xf32> -> vector<8x512xf32>
    %c0_3 = arith.constant 0 : index
    %c0_4 = arith.constant 0 : index
    %4 = vector.load %arg3[%c0_3, %c0_4] : memref<1x512xf32, #tpu.memory_space<vmem>>, vector<1x512xf32>
    %5 = vector.broadcast %4 : vector<1x512xf32> to vector<8x512xf32>
    %6 = arith.addf %3, %5 : vector<8x512xf32>
    %cst_5 = arith.constant 0.000000e+00 : f32
    %7 = vector.broadcast %cst_5 : f32 to vector<8x512xf32>
    %8 = arith.maximumf %6, %7 : vector<8x512xf32>
    %9 = arith.truncf %8 : vector<8x512xf32> to vector<8x512xbf16>
    %c0_6 = arith.constant 0 : index
    %c0_7 = arith.constant 0 : index
    %10 = vector.load %arg4[%c0_6, %c0_7] : memref<512x128xbf16, #tpu.memory_space<vmem>>, vector<512x128xbf16>
    %cst_8 = arith.constant dense<0.000000e+00> : vector<8x128xf32>
    %11 = tpu.matmul %9, %10, %cst_8 {dimension_numbers = #tpu.dot_dimension_numbers<[1], [0], [0], [1], [0, 0, 1, 1], [], []>} : vector<8x512xbf16>, vector<512x128xbf16>, vector<8x128xf32> -> vector<8x128xf32>
    %c0_9 = arith.constant 0 : index
    %c0_10 = arith.constant 0 : index
    %12 = vector.load %arg5[%c0_9, %c0_10] : memref<1x128xf32, #tpu.memory_space<vmem>>, vector<1x128xf32>
    %13 = vector.broadcast %12 : vector<1x128xf32> to vector<8x128xf32>
    %14 = arith.addf %11, %13 : vector<8x128xf32>
    %cst_11 = arith.constant 0.000000e+00 : f32
    %15 = vector.broadcast %cst_11 : f32 to vector<8x128xf32>
    %16 = arith.maximumf %14, %15 : vector<8x128xf32>
    %17 = arith.truncf %16 : vector<8x128xf32> to vector<8x128xbf16>
    %c0_12 = arith.constant 0 : index
    %c0_13 = arith.constant 0 : index
    %18 = vector.load %arg6[%c0_12, %c0_13] : memref<128x8xbf16, #tpu.memory_space<vmem>>, vector<128x8xbf16>
    %cst_14 = arith.constant dense<0.000000e+00> : vector<8x8xf32>
    %19 = tpu.matmul %17, %18, %cst_14 {dimension_numbers = #tpu.dot_dimension_numbers<[1], [0], [0], [1], [0, 0, 1, 1], [], []>} : vector<8x128xbf16>, vector<128x8xbf16>, vector<8x8xf32> -> vector<8x8xf32>
    %c0_15 = arith.constant 0 : index
    %c0_16 = arith.constant 0 : index
    %20 = vector.load %arg7[%c0_15, %c0_16] : memref<1x8xf32, #tpu.memory_space<vmem>>, vector<1x8xf32>
    %21 = vector.broadcast %20 : vector<1x8xf32> to vector<8x8xf32>
    %22 = arith.addf %19, %21 : vector<8x8xf32>
    %cst_17 = arith.constant 0.000000e+00 : f32
    %23 = vector.broadcast %cst_17 : f32 to vector<8x8xf32>
    %24 = arith.maximumf %22, %23 : vector<8x8xf32>
    %c0_18 = arith.constant 0 : index
    %c0_19 = arith.constant 0 : index
    %25 = vector.load %arg8[%c0_18, %c0_19] : memref<8x8xf32, #tpu.memory_space<vmem>>, vector<8x8xf32>
    tpu.vector_store %arg8[%c0_18, %c0_19], %24 {strides = array<i32>} : memref<8x8xf32, #tpu.memory_space<vmem>>, vector<8x8xf32>,
    return
  }
  func.func @transform_0(%arg0: i32) -> (i32, i32) {
    %c0_i32 = arith.constant 0 : i32
    %c0_i32_0 = arith.constant 0 : i32
    return %arg0, %c0_i32 : i32, i32
  }
  func.func @transform_1(%arg0: i32) -> (i32, i32) {
    %c0_i32 = arith.constant 0 : i32
    %c0_i32_0 = arith.constant 0 : i32
    %c0_i32_1 = arith.constant 0 : i32
    return %c0_i32, %c0_i32_0 : i32, i32
  }
  func.func @transform_2(%arg0: i32) -> (i32, i32) {
    %c0_i32 = arith.constant 0 : i32
    %c0_i32_0 = arith.constant 0 : i32
    %c0_i32_1 = arith.constant 0 : i32
    return %c0_i32, %c0_i32_0 : i32, i32
  }
  func.func @transform_3(%arg0: i32) -> (i32, i32) {
    %c0_i32 = arith.constant 0 : i32
    %c0_i32_0 = arith.constant 0 : i32
    %c0_i32_1 = arith.constant 0 : i32
    return %c0_i32, %c0_i32_0 : i32, i32
  }
  func.func @transform_4(%arg0: i32) -> (i32, i32) {
    %c0_i32 = arith.constant 0 : i32
    %c0_i32_0 = arith.constant 0 : i32
    %c0_i32_1 = arith.constant 0 : i32
    return %c0_i32, %c0_i32_0 : i32, i32
  }
  func.func @transform_5(%arg0: i32) -> (i32, i32) {
    %c0_i32 = arith.constant 0 : i32
    %c0_i32_0 = arith.constant 0 : i32
    %c0_i32_1 = arith.constant 0 : i32
    return %c0_i32, %c0_i32_0 : i32, i32
  }
  func.func @transform_6(%arg0: i32) -> (i32, i32) {
    %c0_i32 = arith.constant 0 : i32
    %c0_i32_0 = arith.constant 0 : i32
    %c0_i32_1 = arith.constant 0 : i32
    return %c0_i32, %c0_i32_0 : i32, i32
  }
  func.func @transform_7(%arg0: i32) -> (i32, i32) {
    %c0_i32 = arith.constant 0 : i32
    %c0_i32_0 = arith.constant 0 : i32
    return %arg0, %c0_i32 : i32, i32
  }
}

</mosaic_0001>

<llo_original>
// kernel: simple_model_forward.1
$region0: #{simple_model_forward.1}
  #allocation0 [shape = 'u32[]', space=smem, size = 0x4, offset = 0x4, fixed_abs, tag = 'smem constant byte address 0x4 - core index']
  #allocation1 [shape = 'u32[144,128]{1,0:T(1,128)}', space=vmem, size = 0x12000, scoped, tag = 'internal scratch']
  %s0 = inlined_call_operand.hbm [shape: f32[8,32], index: 0, kind: input, shape index: {}]
  %s1 = inlined_call_operand.vmem [shape: bf16[32,512], index: 1, kind: input, shape index: {}]
  %s2 = inlined_call_operand.vmem [shape: f32[1,512], index: 2, kind: input, shape index: {}]
  %s3 = inlined_call_operand.hbm [shape: bf16[512,128], index: 3, kind: input, shape index: {}]
  %s4 = inlined_call_operand.vmem [shape: f32[1,128], index: 4, kind: input, shape index: {}]
  %s5 = inlined_call_operand.vmem [shape: bf16[128,8], index: 5, kind: input, shape index: {}]
  %s6 = inlined_call_operand.vmem [shape: f32[1,8], index: 6, kind: input, shape index: {}]
  %s7 = inlined_call_operand.hbm [shape: f32[8,8], index: 7, kind: output, shape index: {}]
  %s8 = sld [smem:[#allocation0]]
  $region46: #{simple_model_forward.1} parent=0
    _
  %s10 = ssub.s32 1, %s8
  %s11 = scalar_select 0, %s10, %s8
  $region1: #{simple_model_forward.1} parent=0
    #allocation2 [shape = 'u8[4096]{0}', space=vmem, size = 0x1000, scoped, tag = 'input window, operand 0, single buffered']
    #allocation3 [shape = 's32[1]{0}', space=sflag, size = 0x4, scoped, tag = 'scoped memory for simple_model_forward.1']
    #allocation4 [shape = 's32[1]{0}', space=sflag, size = 0x4, scoped, tag = 'scoped memory for simple_model_forward.1']
    #allocation5 [shape = 'u8[131072]{0}', space=vmem, size = 0x20000, scoped, tag = 'input window, operand 3, single buffered']
    #allocation6 [shape = 's32[1]{0}', space=sflag, size = 0x4, scoped, tag = 'scoped memory for simple_model_forward.1']
    #allocation7 [shape = 'u8[4096]{0}', space=vmem, size = 0x1000, scoped, tag = 'output window, operand 0, single buffered']
    %12 = vsyncpa [#allocation3], 0
    %13 = vsyncpa [#allocation6], 0
    %14 = vsyncpa [#allocation4], 0
    // Predicated region
    $region2: #{simple_model_forward.1} parent=1 // pred_check
      _
    $region3: #{simple_model_forward.1} parent=1 // pred_check_branch
      %16 = sbr.rel (0) target = $region5
    $region4: #{simple_model_forward.1} parent=1 // pred_region
      %s18 = ssub.s32 128, 128
      %19 = vsyncadd [#allocation3], %s18
      %s21 = sshll.u32 [#allocation2], 4
      %s22 = int_to_ptr.vmem [resolvable:$true] %s21
      %24 = dma.hbm_to_vmem [thread:$0]  %s0, 128, %s22, [#allocation3]
    $region5: #{simple_model_forward.1} parent=1 // pred_fallthru
      _
    // Predicated region
    $region6: #{simple_model_forward.1} parent=1 // pred_check
      _
    $region7: #{simple_model_forward.1} parent=1 // pred_check_branch
      %26 = sbr.rel (0) target = $region9
    $region8: #{simple_model_forward.1} parent=1 // pred_region
      _
    $region9: #{simple_model_forward.1} parent=1 // pred_fallthru
      _
    // Predicated region
    $region10: #{simple_model_forward.1} parent=1 // pred_check
      _
    $region11: #{simple_model_forward.1} parent=1 // pred_check_branch
      %28 = sbr.rel (0) target = $region13
    $region12: #{simple_model_forward.1} parent=1 // pred_region
      _
    $region13: #{simple_model_forward.1} parent=1 // pred_fallthru
      _
    // Predicated region
    $region14: #{simple_model_forward.1} parent=1 // pred_check
      _
    $region15: #{simple_model_forward.1} parent=1 // pred_check_branch
      %30 = sbr.rel (0) target = $region17
    $region16: #{simple_model_forward.1} parent=1 // pred_region
      %s32 = ssub.s32 4096, 4096
      %33 = vsyncadd [#allocation6], %s32
      %s34 = sshll.u32 [#allocation5], 4
      %s35 = int_to_ptr.vmem [resolvable:$true] %s34
      %40 = dma.hbm_to_vmem [thread:$0]  %s3, 4096, %s35, [#allocation6], 64, 64, 4
    $region17: #{simple_model_forward.1} parent=1 // pred_fallthru
      _
    // Predicated region
    $region18: #{simple_model_forward.1} parent=1 // pred_check
      _
    $region19: #{simple_model_forward.1} parent=1 // pred_check_branch
      %42 = sbr.rel (0) target = $region21
    $region20: #{simple_model_forward.1} parent=1 // pred_region
      _
    $region21: #{simple_model_forward.1} parent=1 // pred_fallthru
      _
    // Predicated region
    $region22: #{simple_model_forward.1} parent=1 // pred_check
      _
    $region23: #{simple_model_forward.1} parent=1 // pred_check_branch
      %44 = sbr.rel (0) target = $region25
    $region24: #{simple_model_forward.1} parent=1 // pred_region
      _
    $region25: #{simple_model_forward.1} parent=1 // pred_fallthru
      _
    // Predicated region
    $region26: #{simple_model_forward.1} parent=1 // pred_check
      _
    $region27: #{simple_model_forward.1} parent=1 // pred_check_branch
      %46 = sbr.rel (0) target = $region29
    $region28: #{simple_model_forward.1} parent=1 // pred_region
      _
    $region29: #{simple_model_forward.1} parent=1 // pred_fallthru
      _
    // Predicated region
    $region30: #{simple_model_forward.1} parent=1 // pred_check
      _
    $region31: #{simple_model_forward.1} parent=1 // pred_check_branch
      %48 = sbr.rel (0) target = $region33
    $region32: #{simple_model_forward.1} parent=1 // pred_region
      %49 = dma.done [#allocation3], 128
    $region33: #{simple_model_forward.1} parent=1 // pred_fallthru
      _
    // Predicated region
    $region34: #{simple_model_forward.1} parent=1 // pred_check
      _
    $region35: #{simple_model_forward.1} parent=1 // pred_check_branch
      %51 = sbr.rel (0) target = $region37
    $region36: #{simple_model_forward.1} parent=1 // pred_region
      %52 = dma.done [#allocation6], 4096
    $region37: #{simple_model_forward.1} parent=1 // pred_fallthru
      _
    %v54 = vld [vmem:[#allocation2] sm:$0xff]
    %v55 = vpack.c.bf16 %v54, %v54
    %v56 = vld [vmem:[%s1] sm:$0xff]
    %v57 = vld [vmem:[%s1 + $0x8] sm:$0xff]
    %v58 = vld [vmem:[%s1 + $0x10] sm:$0xff]
    %v59 = vld [vmem:[%s1 + $0x18] sm:$0xff]
    %v60 = vld [vmem:[%s1 + $0x20] sm:$0xff]
    %v61 = vld [vmem:[%s1 + $0x28] sm:$0xff]
    %v62 = vld [vmem:[%s1 + $0x30] sm:$0xff]
    %v63 = vld [vmem:[%s1 + $0x38] sm:$0xff]
    %v64 = vld [vmem:[%s2] sm:$0xf]
    %v66 = vlaneseq
    %v67 = vshrl.u32 %v66, 7
    %v68 = vsub.s32 0, %v67
    %v69 = vrot.slane %v64, %v68
    %v70 = vlaneseq
    %v71 = vshrl.u32 %v70, 7
    %v72 = vsub.s32 1, %v71
    %v73 = vrot.slane %v64, %v72
    %v74 = vlaneseq
    %v75 = vshrl.u32 %v74, 7
    %v76 = vsub.s32 2, %v75
    %v77 = vrot.slane %v64, %v76
    %v78 = vlaneseq
    %v79 = vshrl.u32 %v78, 7
    %v80 = vsub.s32 3, %v79
    %v81 = vrot.slane %v64, %v80
    %v94 = vunpack.c.l.b16 %v56
    %v95 = vunpack.c.h.b16 %v56
    %v96 = vunpack.c.l.b16 %v57
    %v97 = vunpack.c.h.b16 %v57
    %v98 = vunpack.c.l.b16 %v58
    %v99 = vunpack.c.h.b16 %v58
    %v100 = vunpack.c.l.b16 %v59
    %v101 = vunpack.c.h.b16 %v59
    %v102 = vunpack.c.l.b16 %v60
    %v103 = vunpack.c.h.b16 %v60
    %v104 = vunpack.c.l.b16 %v61
    %v105 = vunpack.c.h.b16 %v61
    %v106 = vunpack.c.l.b16 %v62
    %v107 = vunpack.c.h.b16 %v62
    %v108 = vunpack.c.l.b16 %v63
    %v109 = vunpack.c.h.b16 %v63
    %v110 = vpack.c.b16 %v98, %v94
    %v111 = vpack.c.b16 %v99, %v95
    %v112 = vpack.c.b16 %v100, %v96
    %v113 = vpack.c.b16 %v101, %v97
    %v114 = vpack.c.b16 %v106, %v102
    %v115 = vpack.c.b16 %v107, %v103
    %v116 = vpack.c.b16 %v108, %v104
    %v117 = vpack.c.b16 %v109, %v105
    %vm126 = vcmask 261120
    %v128 = vsel %vm126, %v55, 0
    %130 = vmatprep.subr.bf16.mxu0 %v111
    %131 = vmatpush1.bf16.msra.mxu0 %v110
    %132 = vmatprep.subr.bf16.mxu0 %v115
    %133 = vmatpush1.bf16.msra.mxu0 %v114
    %134 = vmatprep.subr.bf16.mxu0 0
    %135 = vmatpush1.bf16.msra.mxu0 0
    %136 = vmatprep.subr.bf16.mxu0 0
    %137 = vmatpush1.bf16.msra.mxu0 0
    %138 = vmatprep.subr.bf16.mxu0 0
    %139 = vmatpush1.bf16.msra.mxu0 0
    %140 = vmatprep.subr.bf16.mxu0 0
    %141 = vmatpush1.bf16.msra.mxu0 0
    %142 = vmatprep.subr.bf16.mxu0 0
    %143 = vmatpush1.bf16.msra.mxu0 0
    %144 = vmatprep.subr.bf16.mxu0 0
    %145 = vmatpush1.bf16.msra.mxu0 0
    %146 = vmatprep.subr.bf16.mxu0 0
    %147 = vmatpush1.bf16.msra.mxu0 0
    %148 = vmatprep.subr.bf16.mxu0 0
    %149 = vmatpush1.bf16.msra.mxu0 0
    %150 = vmatprep.subr.bf16.mxu0 0
    %151 = vmatpush1.bf16.msra.mxu0 0
    %152 = vmatprep.subr.bf16.mxu0 0
    %153 = vmatpush1.bf16.msra.mxu0 0
    %154 = vmatprep.subr.bf16.mxu0 0
    %155 = vmatpush1.bf16.msra.mxu0 0
    %156 = vmatprep.subr.bf16.mxu0 0
    %157 = vmatpush1.bf16.msra.mxu0 0
    %158 = vmatprep.subr.bf16.mxu0 0
    %159 = vmatpush1.bf16.msra.mxu0 0
    %160 = vmatprep.subr.bf16.mxu0 0
    %161 = vmatpush1.bf16.msra.mxu0 0
    %162 = vmatprep.mubr.bf16.mxu0 0
    %163 = vmatmul.mubr.bf16.gmra.mrb[0].mxu0 %v128
    %v164 = vpop.f32.mrb[0].mxu0
    %v165 = vadd.f32 %v69, %v164
    %v166 = vpop.f32.mrb[0].mxu0
    %v167 = vadd.f32 %v73, %v166
    %v168 = vpop.f32.mrb[0].mxu0
    %v169 = vpop.f32.mrb[0].mxu0
    %170 = vdwg.mxu0
    %171 = vmatprep.subr.bf16.mxu0 %v113
    %172 = vmatpush1.bf16.msra.mxu0 %v112
    %173 = vmatprep.subr.bf16.mxu0 %v117
    %174 = vmatpush1.bf16.msra.mxu0 %v116
    %175 = vmatprep.subr.bf16.mxu0 0
    %176 = vmatpush1.bf16.msra.mxu0 0
    %177 = vmatprep.subr.bf16.mxu0 0
    %178 = vmatpush1.bf16.msra.mxu0 0
    %179 = vmatprep.subr.bf16.mxu0 0
    %180 = vmatpush1.bf16.msra.mxu0 0
    %181 = vmatprep.subr.bf16.mxu0 0
    %182 = vmatpush1.bf16.msra.mxu0 0
    %183 = vmatprep.subr.bf16.mxu0 0
    %184 = vmatpush1.bf16.msra.mxu0 0
    %185 = vmatprep.subr.bf16.mxu0 0
    %186 = vmatpush1.bf16.msra.mxu0 0
    %187 = vmatprep.subr.bf16.mxu0 0
    %188 = vmatpush1.bf16.msra.mxu0 0
    %189 = vmatprep.subr.bf16.mxu0 0
    %190 = vmatpush1.bf16.msra.mxu0 0
    %191 = vmatprep.subr.bf16.mxu0 0
    %192 = vmatpush1.bf16.msra.mxu0 0
    %193 = vmatprep.subr.bf16.mxu0 0
    %194 = vmatpush1.bf16.msra.mxu0 0
    %195 = vmatprep.subr.bf16.mxu0 0
    %196 = vmatpush1.bf16.msra.mxu0 0
    %197 = vmatprep.subr.bf16.mxu0 0
    %198 = vmatpush1.bf16.msra.mxu0 0
    %199 = vmatprep.subr.bf16.mxu0 0
    %200 = vmatpush1.bf16.msra.mxu0 0
    %201 = vmatprep.subr.bf16.mxu0 0
    %202 = vmatpush1.bf16.msra.mxu0 0
    %203 = vmatprep.mubr.bf16.mxu0 0
    %204 = vmatmul.mubr.bf16.gmra.mrb[0].mxu0 %v128
    %v205 = vpop.f32.mrb[0].mxu0
    %v206 = vadd.f32 %v77, %v205
    %v207 = vpop.f32.mrb[0].mxu0
    %v208 = vadd.f32 %v81, %v207
    %v209 = vpop.f32.mrb[0].mxu0
    %v210 = vpop.f32.mrb[0].mxu0
    %211 = vdwg.mxu0
    %v212 = vmax.f32 %v165, 0.0
    %v213 = vmax.f32 %v167, 0.0
    %v214 = vmax.f32 %v206, 0.0
    %v215 = vmax.f32 %v208, 0.0
    %v216 = vpack.c.bf16 %v212, %v212
    %v217 = vpack.c.bf16 %v213, %v213
    %v218 = vpack.c.bf16 %v214, %v214
    %v219 = vpack.c.bf16 %v215, %v215
    %v220 = vld [vmem:[#allocation5] sm:$0xf]
    %v221 = vld [vmem:[#allocation5 + $0x4] sm:$0xf]
    %v222 = vld [vmem:[#allocation5 + $0x8] sm:$0xf]
    %v223 = vld [vmem:[#allocation5 + $0xc] sm:$0xf]
    %v224 = vld [vmem:[#allocation5 + $0x10] sm:$0xf]
    %v225 = vld [vmem:[#allocation5 + $0x14] sm:$0xf]
    %v226 = vld [vmem:[#allocation5 + $0x18] sm:$0xf]
    %v227 = vld [vmem:[#allocation5 + $0x1c] sm:$0xf]
    %v228 = vld [vmem:[#allocation5 + $0x20] sm:$0xf]
    %v229 = vld [vmem:[#allocation5 + $0x24] sm:$0xf]
    %v230 = vld [vmem:[#allocation5 + $0x28] sm:$0xf]
    %v231 = vld [vmem:[#allocation5 + $0x2c] sm:$0xf]
    %v232 = vld [vmem:[#allocation5 + $0x30] sm:$0xf]
    %v233 = vld [vmem:[#allocation5 + $0x34] sm:$0xf]
    %v234 = vld [vmem:[#allocation5 + $0x38] sm:$0xf]
    %v235 = vld [vmem:[#allocation5 + $0x3c] sm:$0xf]
    %v236 = vld [vmem:[#allocation5 + $0x40] sm:$0xf]
    %v237 = vld [vmem:[#allocation5 + $0x44] sm:$0xf]
    %v238 = vld [vmem:[#allocation5 + $0x48] sm:$0xf]
    %v239 = vld [vmem:[#allocation5 + $0x4c] sm:$0xf]
    %v240 = vld [vmem:[#allocation5 + $0x50] sm:$0xf]
    %v241 = vld [vmem:[#allocation5 + $0x54] sm:$0xf]
    %v242 = vld [vmem:[#allocation5 + $0x58] sm:$0xf]
    %v243 = vld [vmem:[#allocation5 + $0x5c] sm:$0xf]
    %v244 = vld [vmem:[#allocation5 + $0x60] sm:$0xf]
    %v245 = vld [vmem:[#allocation5 + $0x64] sm:$0xf]
    %v246 = vld [vmem:[#allocation5 + $0x68] sm:$0xf]
    %v247 = vld [vmem:[#allocation5 + $0x6c] sm:$0xf]
    %v248 = vld [vmem:[#allocation5 + $0x70] sm:$0xf]
    %v249 = vld [vmem:[#allocation5 + $0x74] sm:$0xf]
    %v250 = vld [vmem:[#allocation5 + $0x78] sm:$0xf]
    %v251 = vld [vmem:[#allocation5 + $0x7c] sm:$0xf]
    %v252 = vld [vmem:[#allocation5 + $0x80] sm:$0xf]
    %v253 = vld [vmem:[#allocation5 + $0x84] sm:$0xf]
    %v254 = vld [vmem:[#allocation5 + $0x88] sm:$0xf]
    %v255 = vld [vmem:[#allocation5 + $0x8c] sm:$0xf]
    %v256 = vld [vmem:[#allocation5 + $0x90] sm:$0xf]
    %v257 = vld [vmem:[#allocation5 + $0x94] sm:$0xf]
    %v258 = vld [vmem:[#allocation5 + $0x98] sm:$0xf]
    %v259 = vld [vmem:[#allocation5 + $0x9c] sm:$0xf]
    %v260 = vld [vmem:[#allocation5 + $0xa0] sm:$0xf]
    %v261 = vld [vmem:[#allocation5 + $0xa4] sm:$0xf]
    %v262 = vld [vmem:[#allocation5 + $0xa8] sm:$0xf]
    %v263 = vld [vmem:[#allocation5 + $0xac] sm:$0xf]
    %v264 = vld [vmem:[#allocation5 + $0xb0] sm:$0xf]
    %v265 = vld [vmem:[#allocation5 + $0xb4] sm:$0xf]
    %v266 = vld [vmem:[#allocation5 + $0xb8] sm:$0xf]
    %v267 = vld [vmem:[#allocation5 + $0xbc] sm:$0xf]
    %v268 = vld [vmem:[#allocation5 + $0xc0] sm:$0xf]
    %v269 = vld [vmem:[#allocation5 + $0xc4] sm:$0xf]
    %v270 = vld [vmem:[#allocation5 + $0xc8] sm:$0xf]
    %v271 = vld [vmem:[#allocation5 + $0xcc] sm:$0xf]
    %v272 = vld [vmem:[#allocation5 + $0xd0] sm:$0xf]
    %v273 = vld [vmem:[#allocation5 + $0xd4] sm:$0xf]
    %v274 = vld [vmem:[#allocation5 + $0xd8] sm:$0xf]
    %v275 = vld [vmem:[#allocation5 + $0xdc] sm:$0xf]
    %v276 = vld [vmem:[#allocation5 + $0xe0] sm:$0xf]
    %v277 = vld [vmem:[#allocation5 + $0xe4] sm:$0xf]
    %v278 = vld [vmem:[#allocation5 + $0xe8] sm:$0xf]
    %v279 = vld [vmem:[#allocation5 + $0xec] sm:$0xf]
    %v280 = vld [vmem:[#allocation5 + $0xf0] sm:$0xf]
    %v281 = vld [vmem:[#allocation5 + $0xf4] sm:$0xf]
    %v282 = vld [vmem:[#allocation5 + $0xf8] sm:$0xf]
    %v283 = vld [vmem:[#allocation5 + $0xfc] sm:$0xf]
    %v284 = vld [vmem:[%s4] sm:$0x1]
    %v286 = vlaneseq
    %v287 = vshrl.u32 %v286, 7
    %v288 = vsub.s32 0, %v287
    %v289 = vrot.slane %v284, %v288
    %v355 = vunpack.c.l.b16 %v220
    %v356 = vunpack.c.l.b16 %v221
    %v357 = vunpack.c.l.b16 %v222
    %v358 = vunpack.c.l.b16 %v223
    %v359 = vunpack.c.l.b16 %v224
    %v360 = vunpack.c.l.b16 %v225
    %v361 = vunpack.c.l.b16 %v226
    %v362 = vunpack.c.l.b16 %v227
    %v363 = vunpack.c.l.b16 %v228
    %v364 = vunpack.c.l.b16 %v229
    %v365 = vunpack.c.l.b16 %v230
    %v366 = vunpack.c.l.b16 %v231
    %v367 = vunpack.c.l.b16 %v232
    %v368 = vunpack.c.l.b16 %v233
    %v369 = vunpack.c.l.b16 %v234
    %v370 = vunpack.c.l.b16 %v235
    %v371 = vunpack.c.l.b16 %v236
    %v372 = vunpack.c.l.b16 %v237
    %v373 = vunpack.c.l.b16 %v238
    %v374 = vunpack.c.l.b16 %v239
    %v375 = vunpack.c.l.b16 %v240
    %v376 = vunpack.c.l.b16 %v241
    %v377 = vunpack.c.l.b16 %v242
    %v378 = vunpack.c.l.b16 %v243
    %v379 = vunpack.c.l.b16 %v244
    %v380 = vunpack.c.l.b16 %v245
    %v381 = vunpack.c.l.b16 %v246
    %v382 = vunpack.c.l.b16 %v247
    %v383 = vunpack.c.l.b16 %v248
    %v384 = vunpack.c.l.b16 %v249
    %v385 = vunpack.c.l.b16 %v250
    %v386 = vunpack.c.l.b16 %v251
    %v387 = vunpack.c.l.b16 %v252
    %v388 = vunpack.c.l.b16 %v253
    %v389 = vunpack.c.l.b16 %v254
    %v390 = vunpack.c.l.b16 %v255
    %v391 = vunpack.c.l.b16 %v256
    %v392 = vunpack.c.l.b16 %v257
    %v393 = vunpack.c.l.b16 %v258
    %v394 = vunpack.c.l.b16 %v259
    %v395 = vunpack.c.l.b16 %v260
    %v396 = vunpack.c.l.b16 %v261
    %v397 = vunpack.c.l.b16 %v262
    %v398 = vunpack.c.l.b16 %v263
    %v399 = vunpack.c.l.b16 %v264
    %v400 = vunpack.c.l.b16 %v265
    %v401 = vunpack.c.l.b16 %v266
    %v402 = vunpack.c.l.b16 %v267
    %v403 = vunpack.c.l.b16 %v268
    %v404 = vunpack.c.l.b16 %v269
    %v405 = vunpack.c.l.b16 %v270
    %v406 = vunpack.c.l.b16 %v271
    %v407 = vunpack.c.l.b16 %v272
    %v408 = vunpack.c.l.b16 %v273
    %v409 = vunpack.c.l.b16 %v274
    %v410 = vunpack.c.l.b16 %v275
    %v411 = vunpack.c.l.b16 %v276
    %v412 = vunpack.c.l.b16 %v277
    %v413 = vunpack.c.l.b16 %v278
    %v414 = vunpack.c.l.b16 %v279
    %v415 = vunpack.c.l.b16 %v280
    %v416 = vunpack.c.l.b16 %v281
    %v417 = vunpack.c.l.b16 %v282
    %v418 = vunpack.c.l.b16 %v283
    %v419 = vpack.c.b16 %v356, %v355
    %v420 = vpack.c.b16 %v358, %v357
    %v421 = vpack.c.b16 %v360, %v359
    %v422 = vpack.c.b16 %v362, %v361
    %v423 = vpack.c.b16 %v364, %v363
    %v424 = vpack.c.b16 %v366, %v365
    %v425 = vpack.c.b16 %v368, %v367
    %v426 = vpack.c.b16 %v370, %v369
    %v427 = vpack.c.b16 %v372, %v371
    %v428 = vpack.c.b16 %v374, %v373
    %v429 = vpack.c.b16 %v376, %v375
    %v430 = vpack.c.b16 %v378, %v377
    %v431 = vpack.c.b16 %v380, %v379
    %v432 = vpack.c.b16 %v382, %v381
    %v433 = vpack.c.b16 %v384, %v383
    %v434 = vpack.c.b16 %v386, %v385
    %v435 = vpack.c.b16 %v388, %v387
    %v436 = vpack.c.b16 %v390, %v389
    %v437 = vpack.c.b16 %v392, %v391
    %v438 = vpack.c.b16 %v394, %v393
    %v439 = vpack.c.b16 %v396, %v395
    %v440 = vpack.c.b16 %v398, %v397
    %v441 = vpack.c.b16 %v400, %v399
    %v442 = vpack.c.b16 %v402, %v401
    %v443 = vpack.c.b16 %v404, %v403
    %v444 = vpack.c.b16 %v406, %v405
    %v445 = vpack.c.b16 %v408, %v407
    %v446 = vpack.c.b16 %v410, %v409
    %v447 = vpack.c.b16 %v412, %v411
    %v448 = vpack.c.b16 %v414, %v413
    %v449 = vpack.c.b16 %v416, %v415
    %v450 = vpack.c.b16 %v418, %v417
    %483 = vmatprep.subr.bf16.mxu0 0
    %484 = vmatpush1.bf16.msra.mxu0 %v419
    %485 = vmatprep.subr.bf16.mxu0 0
    %486 = vmatpush1.bf16.msra.mxu0 %v420
    %487 = vmatprep.subr.bf16.mxu0 0
    %488 = vmatpush1.bf16.msra.mxu0 %v421
    %489 = vmatprep.subr.bf16.mxu0 0
    %490 = vmatpush1.bf16.msra.mxu0 %v422
    %491 = vmatprep.subr.bf16.mxu0 0
    %492 = vmatpush1.bf16.msra.mxu0 %v423
    %493 = vmatprep.subr.bf16.mxu0 0
    %494 = vmatpush1.bf16.msra.mxu0 %v424
    %495 = vmatprep.subr.bf16.mxu0 0
    %496 = vmatpush1.bf16.msra.mxu0 %v425
    %497 = vmatprep.subr.bf16.mxu0 0
    %498 = vmatpush1.bf16.msra.mxu0 %v426
    %499 = vmatprep.subr.bf16.mxu0 0
    %500 = vmatpush1.bf16.msra.mxu0 %v427
    %501 = vmatprep.subr.bf16.mxu0 0
    %502 = vmatpush1.bf16.msra.mxu0 %v428
    %503 = vmatprep.subr.bf16.mxu0 0
    %504 = vmatpush1.bf16.msra.mxu0 %v429
    %505 = vmatprep.subr.bf16.mxu0 0
    %506 = vmatpush1.bf16.msra.mxu0 %v430
    %507 = vmatprep.subr.bf16.mxu0 0
    %508 = vmatpush1.bf16.msra.mxu0 %v431
    %509 = vmatprep.subr.bf16.mxu0 0
    %510 = vmatpush1.bf16.msra.mxu0 %v432
    %511 = vmatprep.subr.bf16.mxu0 0
    %512 = vmatpush1.bf16.msra.mxu0 %v433
    %513 = vmatprep.subr.bf16.mxu0 0
    %514 = vmatpush1.bf16.msra.mxu0 %v434
    %515 = vmatprep.mubr.bf16.mxu0 %v217
    %516 = vmatmul.mubr.bf16.gmra.mrb[0].mxu0 %v216
    %v517 = vpop.f32.mrb[0].mxu0
    %v518 = vadd.f32 %v289, %v517
    %v519 = vpop.f32.mrb[0].mxu0
    %v520 = vpop.f32.mrb[0].mxu0
    %v521 = vpop.f32.mrb[0].mxu0
    %522 = vdwg.mxu0
    %523 = vmatprep.subr.bf16.mxu0 0
    %524 = vmatpush1.bf16.msra.mxu0 %v435
    %525 = vmatprep.subr.bf16.mxu0 0
    %526 = vmatpush1.bf16.msra.mxu0 %v436
    %527 = vmatprep.subr.bf16.mxu0 0
    %528 = vmatpush1.bf16.msra.mxu0 %v437
    %529 = vmatprep.subr.bf16.mxu0 0
    %530 = vmatpush1.bf16.msra.mxu0 %v438
    %531 = vmatprep.subr.bf16.mxu0 0
    %532 = vmatpush1.bf16.msra.mxu0 %v439
    %533 = vmatprep.subr.bf16.mxu0 0
    %534 = vmatpush1.bf16.msra.mxu0 %v440
    %535 = vmatprep.subr.bf16.mxu0 0
    %536 = vmatpush1.bf16.msra.mxu0 %v441
    %537 = vmatprep.subr.bf16.mxu0 0
    %538 = vmatpush1.bf16.msra.mxu0 %v442
    %539 = vmatprep.subr.bf16.mxu0 0
    %540 = vmatpush1.bf16.msra.mxu0 %v443
    %541 = vmatprep.subr.bf16.mxu0 0
    %542 = vmatpush1.bf16.msra.mxu0 %v444
    %543 = vmatprep.subr.bf16.mxu0 0
    %544 = vmatpush1.bf16.msra.mxu0 %v445
    %545 = vmatprep.subr.bf16.mxu0 0
    %546 = vmatpush1.bf16.msra.mxu0 %v446
    %547 = vmatprep.subr.bf16.mxu0 0
    %548 = vmatpush1.bf16.msra.mxu0 %v447
    %549 = vmatprep.subr.bf16.mxu0 0
    %550 = vmatpush1.bf16.msra.mxu0 %v448
    %551 = vmatprep.subr.bf16.mxu0 0
    %552 = vmatpush1.bf16.msra.mxu0 %v449
    %553 = vmatprep.subr.bf16.mxu0 0
    %554 = vmatpush1.bf16.msra.mxu0 %v450
    %555 = vmatprep.mubr.bf16.mxu0 %v219
    %556 = vmatmul.mubr.bf16.gmra.mrb[0].mxu0 %v218
    %v557 = vpop.f32.mrb[0].mxu0
    %v558 = vadd.f32 %v518, %v557
    %v559 = vpop.f32.mrb[0].mxu0
    %v560 = vpop.f32.mrb[0].mxu0
    %v561 = vpop.f32.mrb[0].mxu0
    %562 = vdwg.mxu0
    %v563 = vmax.f32 %v558, 0.0
    %v564 = vpack.c.bf16 %v563, %v563
    %v565 = vld [vmem:[%s5] sm:$0xf]
    %v566 = vld [vmem:[%s5 + $0x4] sm:$0xf]
    %v567 = vld [vmem:[%s5 + $0x8] sm:$0xf]
    %v568 = vld [vmem:[%s5 + $0xc] sm:$0xf]
    %v569 = vld [vmem:[%s5 + $0x10] sm:$0xf]
    %v570 = vld [vmem:[%s5 + $0x14] sm:$0xf]
    %v571 = vld [vmem:[%s5 + $0x18] sm:$0xf]
    %v572 = vld [vmem:[%s5 + $0x1c] sm:$0xf]
    %v573 = vld [vmem:[%s5 + $0x20] sm:$0xf]
    %v574 = vld [vmem:[%s5 + $0x24] sm:$0xf]
    %v575 = vld [vmem:[%s5 + $0x28] sm:$0xf]
    %v576 = vld [vmem:[%s5 + $0x2c] sm:$0xf]
    %v577 = vld [vmem:[%s5 + $0x30] sm:$0xf]
    %v578 = vld [vmem:[%s5 + $0x34] sm:$0xf]
    %v579 = vld [vmem:[%s5 + $0x38] sm:$0xf]
    %v580 = vld [vmem:[%s5 + $0x3c] sm:$0xf]
    %v581 = vld [vmem:[%s6] sm:$0x1]
    %v583 = vlaneseq
    %v584 = vshrl.u32 %v583, 7
    %v585 = vsub.s32 0, %v584
    %v586 = vrot.slane %v581, %v585
    %v604 = vunpack.c.l.b16 %v565
    %v605 = vunpack.c.l.b16 %v566
    %v606 = vunpack.c.l.b16 %v567
    %v607 = vunpack.c.l.b16 %v568
    %v608 = vunpack.c.l.b16 %v569
    %v609 = vunpack.c.l.b16 %v570
    %v610 = vunpack.c.l.b16 %v571
    %v611 = vunpack.c.l.b16 %v572
    %v612 = vunpack.c.l.b16 %v573
    %v613 = vunpack.c.l.b16 %v574
    %v614 = vunpack.c.l.b16 %v575
    %v615 = vunpack.c.l.b16 %v576
    %v616 = vunpack.c.l.b16 %v577
    %v617 = vunpack.c.l.b16 %v578
    %v618 = vunpack.c.l.b16 %v579
    %v619 = vunpack.c.l.b16 %v580
    %v620 = vpack.c.b16 %v605, %v604
    %v621 = vpack.c.b16 %v607, %v606
    %v622 = vpack.c.b16 %v609, %v608
    %v623 = vpack.c.b16 %v611, %v610
    %v624 = vpack.c.b16 %v613, %v612
    %v625 = vpack.c.b16 %v615, %v614
    %v626 = vpack.c.b16 %v617, %v616
    %v627 = vpack.c.b16 %v619, %v618
    %636 = vmatprep.subr.bf16.mxu0 0
    %637 = vmatpush1.bf16.msra.mxu0 %v620
    %638 = vmatprep.subr.bf16.mxu0 0
    %639 = vmatpush1.bf16.msra.mxu0 %v621
    %640 = vmatprep.subr.bf16.mxu0 0
    %641 = vmatpush1.bf16.msra.mxu0 %v622
    %642 = vmatprep.subr.bf16.mxu0 0
    %643 = vmatpush1.bf16.msra.mxu0 %v623
    %644 = vmatprep.subr.bf16.mxu0 0
    %645 = vmatpush1.bf16.msra.mxu0 %v624
    %646 = vmatprep.subr.bf16.mxu0 0
    %647 = vmatpush1.bf16.msra.mxu0 %v625
    %648 = vmatprep.subr.bf16.mxu0 0
    %649 = vmatpush1.bf16.msra.mxu0 %v626
    %650 = vmatprep.subr.bf16.mxu0 0
    %651 = vmatpush1.bf16.msra.mxu0 %v627
    %652 = vmatprep.subr.bf16.mxu0 0
    %653 = vmatpush1.bf16.msra.mxu0 0
    %654 = vmatprep.subr.bf16.mxu0 0
    %655 = vmatpush1.bf16.msra.mxu0 0
    %656 = vmatprep.subr.bf16.mxu0 0
    %657 = vmatpush1.bf16.msra.mxu0 0
    %658 = vmatprep.subr.bf16.mxu0 0
    %659 = vmatpush1.bf16.msra.mxu0 0
    %660 = vmatprep.subr.bf16.mxu0 0
    %661 = vmatpush1.bf16.msra.mxu0 0
    %662 = vmatprep.subr.bf16.mxu0 0
    %663 = vmatpush1.bf16.msra.mxu0 0
    %664 = vmatprep.subr.bf16.mxu0 0
    %665 = vmatpush1.bf16.msra.mxu0 0
    %666 = vmatprep.subr.bf16.mxu0 0
    %667 = vmatpush1.bf16.msra.mxu0 0
    %668 = vmatprep.mubr.bf16.mxu0 0
    %669 = vmatmul.mubr.bf16.gmra.mrb[0].mxu0 %v564
    %v670 = vpop.f32.mrb[0].mxu0
    %v671 = vadd.f32 %v586, %v670
    %v672 = vpop.f32.mrb[0].mxu0
    %v673 = vpop.f32.mrb[0].mxu0
    %v674 = vpop.f32.mrb[0].mxu0
    %675 = vdwg.mxu0
    %v676 = vmax.f32 %v671, 0.0
    %vm677 = vcmask 64512
    %678 = vst.msk [vmem:[#allocation7] sm:$0xff] %vm677, %v676
    // Predicated region
    $region38: #{simple_model_forward.1} parent=1 // pred_check
      _
    $region39: #{simple_model_forward.1} parent=1 // pred_check_branch
      %680 = sbr.rel (0) target = $region41
    $region40: #{simple_model_forward.1} parent=1 // pred_region
      %s682 = ssub.s32 128, 128
      %683 = vsyncadd [#allocation4], %s682
      %s685 = sshll.u32 [#allocation7], 4
      %s686 = int_to_ptr.vmem [resolvable:$true] %s685
      %688 = dma.vmem_to_hbm [thread:$0]  %s686, 128, %s7, [#allocation4]
    $region41: #{simple_model_forward.1} parent=1 // pred_fallthru
      _
    // Predicated region
    $region42: #{simple_model_forward.1} parent=1 // pred_check
      _
    $region43: #{simple_model_forward.1} parent=1 // pred_check_branch
      %690 = sbr.rel (0) target = $region45
    $region44: #{simple_model_forward.1} parent=1 // pred_region
      %691 = dma.done [#allocation4], 128
    $region45: #{simple_model_forward.1} parent=1 // pred_fallthru
      _
    %692 = vsyncpa [#allocation3], 1
    %693 = vsyncpa [#allocation6], 1
    %694 = vsyncpa [#allocation4], 1

</llo_original>
